<compile_context>
chip_gen: v6e
topology: v6e:2x2x1
jax: 0.10.0
libtpu: 0.0.40
codegen_flags: <defaults>
</compile_context>

<pallas_src>
import functools

import jax
import jax.numpy as jnp
from jax.experimental import pallas as pl
from jax.experimental.pallas import tpu as pltpu


def _lsce_kernel(logits_ref, label_ref, out_ref, acc_sum, acc_cnt, cls_ref, *,
                 lb_smooth, num_classes, ignore_index, hw, tile, tiles_per_chunk):
    c = pl.program_id(1)          # pixel-chunk index (parallel; megacore)
    j = pl.program_id(2)          # pixel-tile index inside the chunk (reduction axis)

    @pl.when(j == 0)
    def _init():
        acc_sum[...] = jnp.zeros_like(acc_sum)
        acc_cnt[...] = jnp.zeros_like(acc_cnt)
        # Hoisted class iota: generated once per reduction loop, re-read from VMEM
        # each step (vld slots have slack; VALU is the binding unit on v6e/v7x).
        cls_ref[...] = jax.lax.broadcasted_iota(jnp.int32, cls_ref.shape, 0)

    x = logits_ref[0].astype(jnp.float32)              # (C, tile) upcast per-tile
    lbl = label_ref[0]                                 # (1, tile) int32

    # Mask lanes beyond H*W (partial last tile and clamped phantom tiles).
    pix0 = (c * tiles_per_chunk + j) * tile
    lane = jax.lax.broadcasted_iota(jnp.int32, (1, tile), 1)
    oob = (pix0 + lane) >= hw                          # (1, tile) bool
    ignore = jnp.logical_or(lbl == ignore_index, oob)  # (1, tile) bool
    lbl_clean = jnp.where(ignore, 0, lbl)              # label[ignore] = 0

    # Numerically-stable pieces.  The running max cancels out of the loss:
    #   logs = x - lse = s - logZ   with   s = x - m,  logZ = log(sum(exp(s))).
    m = jnp.max(x, axis=0, keepdims=True)                               # (1, tile)
    s = x - m                                                           # (C, tile)
    logz = jnp.log(jnp.sum(jnp.exp(s), axis=0, keepdims=True))          # (1, tile)

    cls = cls_ref[...]                                                  # (C, tile)
    gathered_s = jnp.sum(jnp.where(cls == lbl_clean, s, 0.0),
                         axis=0, keepdims=True)                         # (1, tile)
    sum_s = jnp.sum(s, axis=0, keepdims=True)                           # (1, tile)

    lb_pos = jnp.float32(1.0 - lb_smooth)
    lb_neg = jnp.float32(lb_smooth / num_classes)
    # loss = -sum_c(logs * lb_one_hot)
    #      = (1 - lb_neg)*logZ - lb_neg*sum(s) - (lb_pos - lb_neg)*s[label]
    loss = ((jnp.float32(1.0) - lb_neg) * logz
            - lb_neg * sum_s - (lb_pos - lb_neg) * gathered_s)          # (1, tile)
    # Mask BEFORE accumulation so garbage/NaN in padded lanes never escapes the select.
    loss = jnp.where(ignore, 0.0, loss)
    valid = jnp.where(ignore, 0.0, 1.0)

    acc_sum[...] += loss
    acc_cnt[...] += valid

    @pl.when(j == pl.num_programs(2) - 1)
    def _finalize():
        total = jnp.sum(acc_sum[...])
        count = jnp.sum(acc_cnt[...])
        sel = jax.lax.broadcasted_iota(jnp.int32, (1, 1, 2, 128), 2)
        out_ref[...] = jnp.where(sel == 0, total, count)   # row 0: loss sum, row 1: count


def _vmem_limit_bytes():
    """Generation-aware VMEM ceiling (v7x: 64 MiB/TC; v5e/v6e: 128 MiB)."""
    cap = 64 << 20
    try:
        cap = int(getattr(pltpu.get_tpu_info(), "vmem_capacity_bytes", cap))
    except Exception:
        pass
    return min(int(cap * 3 // 4), 100 << 20)


def _pick_tile(C, HW, itemsize, budget_bytes, max_tile=32768):
    """Largest multiple-of-128 lane tile whose full VMEM footprint fits the budget."""
    # Per-lane bytes:
    #   logits double buffer            : 2 * C * itemsize
    #   label double buffer (int32)     : 2 * 4
    #   f32 working set (x, s, exp, sel): 4 * C * 4
    #   class-iota scratch (int32)      : C * 4
    #   two (1, tile) f32 accumulators  : 2 * 4
    per_lane = 2 * C * itemsize + 2 * 4 + 4 * C * 4 + C * 4 + 2 * 4
    hw_cap = int(pl.cdiv(HW, 128)) * 128
    t = budget_bytes // max(per_lane, 1)
    t = min(int(t), int(max_tile), hw_cap)
    t = max(128, (t // 128) * 128)
    return int(t)


def label_smooth_softmax_ce(logits, label, *, lb_smooth=0.1, reduction="mean",
                            ignore_index=255, max_lane_tile=32768):
    """logits: (N, C, H, W) float/bf16; label: (N, H, W) int. Matches LabelSmoothSoftmaxCEV1."""
    # TODO(synk): pixel_weight, reduction='none' and already_softmax=True are not implemented.
    # TODO(synk): pixels-on-sublanes layout (small / odd C with W % 128 == 0) and MXU offload
    #             of the class-axis sums (C >= 64) are follow-up optimizations.
    N, C, H, W = logits.shape
    HW = H * W

    # Free reshapes only -- no HBM transpose, no pad, no dtype cast of the big tensor.
    logits3 = logits.reshape(N, C, HW)
    label3 = label.reshape(N, 1, HW).astype(jnp.int32)

    itemsize = jnp.dtype(logits.dtype).itemsize
    vmem_limit = _vmem_limit_bytes()
    budget = max(vmem_limit - (4 << 20), 8 << 20)
    tile = _pick_tile(C, HW, itemsize, budget, max_tile=max_lane_tile)
    n_tiles = int(pl.cdiv(HW, tile))

    # Second "parallel" axis over pixel chunks keeps both v7x TensorCores busy at N == 1.
    n_chunks = 2 if n_tiles >= 2 else 1
    tiles_per_chunk = int(pl.cdiv(n_tiles, n_chunks))
    last_tile = n_tiles - 1

    def pix_map(n, c, j):
        # Clamp phantom tiles (only when n_tiles is odd) to the last real tile;
        # the in-kernel lane mask zeroes their contribution.
        return (n, 0, jnp.minimum(c * tiles_per_chunk + j, last_tile))

    kernel = functools.partial(
        _lsce_kernel, lb_smooth=lb_smooth, num_classes=C, ignore_index=ignore_index,
        hw=HW, tile=tile, tiles_per_chunk=tiles_per_chunk)

    part = pl.pallas_call(
        kernel,
        out_shape=jax.ShapeDtypeStruct((N, n_chunks, 2, 128), jnp.float32),
        grid_spec=pltpu.PrefetchScalarGridSpec(
            num_scalar_prefetch=0,
            grid=(N, n_chunks, tiles_per_chunk),
            in_specs=[pl.BlockSpec((1, C, tile), pix_map),
                      pl.BlockSpec((1, 1, tile), pix_map)],
            out_specs=pl.BlockSpec((1, 1, 2, 128), lambda n, c, j: (n, c, 0, 0)),
            scratch_shapes=[pltpu.VMEM((1, tile), jnp.float32),
                            pltpu.VMEM((1, tile), jnp.float32),
                            pltpu.VMEM((C, tile), jnp.int32)]),
        compiler_params=pltpu.CompilerParams(
            dimension_semantics=("parallel", "parallel", "arbitrary"),
            vmem_limit_bytes=vmem_limit),
        cost_estimate=pl.CostEstimate(
            flops=int(7 * C * N * HW),
            transcendentals=int((C + 1) * N * HW),
            bytes_accessed=int(C * N * HW * itemsize + N * HW * 4)),
    )(logits3, label3)

    loss_sum = jnp.sum(part[:, :, 0, 0])
    n_valid = jnp.sum(part[:, :, 1, 0])
    if reduction == "mean":
        # Matches PyTorch/reference: an all-ignore batch yields inf/nan (divide by zero).
        return loss_sum / n_valid
    if reduction == "sum":
        return loss_sum
    raise NotImplementedError("reduction='none' not supported by this kernel")


def _reference(logits, label, lb_smooth=0.1, ignore_index=255):
    logits = logits.astype(jnp.float32)
    C = logits.shape[1]
    ignore = label == ignore_index
    n_valid = jnp.sum((~ignore).astype(jnp.float32))
    lbl = jnp.where(ignore, 0, label)
    lb_pos, lb_neg = 1.0 - lb_smooth, lb_smooth / C
    onehot = jax.nn.one_hot(lbl, C, axis=1, dtype=jnp.float32)
    lb_one_hot = onehot * lb_pos + (1.0 - onehot) * lb_neg
    logs = jax.nn.log_softmax(logits, axis=1)
    loss = -jnp.sum(logs * lb_one_hot, axis=1)
    loss = jnp.where(ignore, 0.0, loss)
    return jnp.sum(loss) / n_valid


if __name__ == "__main__":
    key = jax.random.PRNGKey(0)

    # Case 1: small NCHW, tile-aligned H*W.
    k1, k2, k3 = jax.random.split(key, 3)
    N, C, H, W = 2, 4, 16, 16
    logits = jax.random.normal(k1, (N, C, H, W), dtype=jnp.float32)
    label = jax.random.randint(k2, (N, H, W), 0, C, dtype=jnp.int32)
    label = jnp.where(jax.random.uniform(k3, (N, H, W)) < 0.1, 255, label)

    loss = jax.block_until_ready(label_smooth_softmax_ce(logits, label))
    ref = _reference(logits, label)
    assert jnp.allclose(loss, ref, rtol=1e-4, atol=1e-5), (loss, ref)

    # Case 2: odd class count and non-128-aligned H*W (exercises the in-kernel lane mask).
    k4, k5, k6 = jax.random.split(jax.random.PRNGKey(1), 3)
    N2, C2, H2, W2 = 1, 19, 15, 15
    logits2 = jax.random.normal(k4, (N2, C2, H2, W2), dtype=jnp.float32)
    label2 = jax.random.randint(k5, (N2, H2, W2), 0, C2, dtype=jnp.int32)
    label2 = jnp.where(jax.random.uniform(k6, (N2, H2, W2)) < 0.1, 255, label2)

    loss2 = jax.block_until_ready(label_smooth_softmax_ce(logits2, label2))
    ref2 = _reference(logits2, label2)
    assert jnp.allclose(loss2, ref2, rtol=1e-4, atol=1e-5), (loss2, ref2)

    # Case 3: forced small tile so the 2-chunk parallel axis, the index_map clamp and the
    # phantom-tile masking are all exercised (3 tiles split 2 + 2 with one phantom).
    k7, k8, k9 = jax.random.split(jax.random.PRNGKey(2), 3)
    N3, C3, H3, W3 = 1, 7, 16, 24
    logits3 = jax.random.normal(k7, (N3, C3, H3, W3), dtype=jnp.float32)
    label3 = jax.random.randint(k8, (N3, H3, W3), 0, C3, dtype=jnp.int32)
    label3 = jnp.where(jax.random.uniform(k9, (N3, H3, W3)) < 0.1, 255, label3)

    loss3 = jax.block_until_ready(
        label_smooth_softmax_ce(logits3, label3, max_lane_tile=128))
    ref3 = _reference(logits3, label3)
    assert jnp.allclose(loss3, ref3, rtol=1e-4, atol=1e-5), (loss3, ref3)

    print("KERNEL_OK")
</pallas_src>

<mosaic_0001>
module attributes {stable_mosaic.version = 11 : i64} {
  func.func @_lsce_kernel(%arg0: i32, %arg1: i32, %arg2: i32, %arg3: memref<1x4x256xf32, #tpu.memory_space<vmem>>, %arg4: memref<1x1x256xi32, #tpu.memory_space<vmem>>, %arg5: memref<1x1x2x128xf32, #tpu.memory_space<vmem>>, %arg6: memref<1x256xf32, #tpu.memory_space<vmem>>, %arg7: memref<1x256xf32, #tpu.memory_space<vmem>>, %arg8: memref<4x256xi32, #tpu.memory_space<vmem>>) attributes {dimension_semantics = [#tpu.dimension_semantics<parallel>, #tpu.dimension_semantics<parallel>, #tpu.dimension_semantics<arbitrary>], iteration_bounds = array<i64: 2, 1, 1>, scalar_prefetch = 0 : i64, scratch_operands = 3 : i64, tpu.core_type = #tpu.core_type<tc>, window_params = [{transform_indices = @transform_0, window_bounds = array<i64: 1, 4, 256>}, {transform_indices = @transform_1, window_bounds = array<i64: 1, 1, 256>}, {transform_indices = @transform_2, window_bounds = array<i64: 1, 1, 2, 128>}]} {
    %c0_i32 = arith.constant 0 : i32
    %0 = arith.cmpi eq, %arg2, %c0_i32 : i32
    %1 = arith.extui %0 : i1 to i32
    %c0_i32_0 = arith.constant 0 : i32
    %2 = arith.cmpi ne, %1, %c0_i32_0 : i32
    scf.if %2 {
      %cst_32 = arith.constant 0.000000e+00 : f32
      %61 = vector.broadcast %cst_32 : f32 to vector<1x256xf32>
      %c0_33 = arith.constant 0 : index
      %c0_34 = arith.constant 0 : index
      %62 = vector.load %arg6[%c0_33, %c0_34] : memref<1x256xf32, #tpu.memory_space<vmem>>, vector<1x256xf32>
      tpu.vector_store %arg6[%c0_33, %c0_34], %61 {strides = array<i32>} : memref<1x256xf32, #tpu.memory_space<vmem>>, vector<1x256xf32>,
      %cst_35 = arith.constant 0.000000e+00 : f32
      %63 = vector.broadcast %cst_35 : f32 to vector<1x256xf32>
      %c0_36 = arith.constant 0 : index
      %c0_37 = arith.constant 0 : index
      %64 = vector.load %arg7[%c0_36, %c0_37] : memref<1x256xf32, #tpu.memory_space<vmem>>, vector<1x256xf32>
      tpu.vector_store %arg7[%c0_36, %c0_37], %63 {strides = array<i32>} : memref<1x256xf32, #tpu.memory_space<vmem>>, vector<1x256xf32>,
      %65 = tpu.iota {dimensions = array<i32: 0>} : vector<4x256xi32>
      %c0_38 = arith.constant 0 : index
      %c0_39 = arith.constant 0 : index
      %66 = vector.load %arg8[%c0_38, %c0_39] : memref<4x256xi32, #tpu.memory_space<vmem>>, vector<4x256xi32>
      tpu.vector_store %arg8[%c0_38, %c0_39], %65 {strides = array<i32>} : memref<4x256xi32, #tpu.memory_space<vmem>>, vector<4x256xi32>,
    } else {
    }
    %c0 = arith.constant 0 : index
    %c0_1 = arith.constant 0 : index
    %c0_2 = arith.constant 0 : index
    %3 = vector.load %arg3[%c0, %c0_1, %c0_2] : memref<1x4x256xf32, #tpu.memory_space<vmem>>, vector<1x4x256xf32>
    %4 = vector.shape_cast %3 : vector<1x4x256xf32> to vector<4x256xf32>
    %c0_3 = arith.constant 0 : index
    %c0_4 = arith.constant 0 : index
    %c0_5 = arith.constant 0 : index
    %5 = vector.load %arg4[%c0_3, %c0_4, %c0_5] : memref<1x1x256xi32, #tpu.memory_space<vmem>>, vector<1x1x256xi32>
    %6 = vector.shape_cast %5 : vector<1x1x256xi32> to vector<1x256xi32>
    %c1_i32 = arith.constant 1 : i32
    %7 = arith.muli %arg1, %c1_i32 : i32
    %8 = arith.addi %7, %arg2 : i32
    %c256_i32 = arith.constant 256 : i32
    %9 = arith.muli %8, %c256_i32 : i32
    %10 = tpu.iota {dimensions = array<i32: 1>} : vector<1x256xi32>
    %11 = vector.broadcast %9 : i32 to vector<1x256xi32>
    %12 = arith.addi %11, %10 : vector<1x256xi32>
    %c256_i32_6 = arith.constant 256 : i32
    %13 = vector.broadcast %c256_i32_6 : i32 to vector<1x256xi32>
    %14 = arith.cmpi sge, %12, %13 : vector<1x256xi32>
    %c255_i32 = arith.constant 255 : i32
    %15 = vector.broadcast %c255_i32 : i32 to vector<1x256xi32>
    %16 = arith.cmpi eq, %6, %15 : vector<1x256xi32>
    %17 = arith.ori %16, %14 : vector<1x256xi1>
    %c0_i32_7 = arith.constant 0 : i32
    %18 = vector.broadcast %c0_i32_7 : i32 to vector<1x256xi32>
    %19 = arith.select %17, %18, %6 : vector<1x256xi1>, vector<1x256xi32>
    %cst = arith.constant dense<0xFF800000> : vector<256xf32>
    %20 = vector.multi_reduction <maximumf>, %4, %cst [0] : vector<4x256xf32> to vector<256xf32>
    %21 = vector.shape_cast %20 : vector<256xf32> to vector<1x256xf32>
    %22 = vector.broadcast %21 : vector<1x256xf32> to vector<4x256xf32>
    %23 = arith.subf %4, %22 : vector<4x256xf32>
    %24 = math.exp %23 : vector<4x256xf32>
    %cst_8 = arith.constant dense<0.000000e+00> : vector<256xf32>
    %25 = vector.multi_reduction <add>, %24, %cst_8 [0] : vector<4x256xf32> to vector<256xf32>
    %26 = vector.shape_cast %25 : vector<256xf32> to vector<1x256xf32>
    %27 = math.log %26 : vector<1x256xf32>
    %c0_9 = arith.constant 0 : index
    %c0_10 = arith.constant 0 : index
    %28 = vector.load %arg8[%c0_9, %c0_10] : memref<4x256xi32, #tpu.memory_space<vmem>>, vector<4x256xi32>
    %29 = vector.broadcast %19 : vector<1x256xi32> to vector<4x256xi32>
    %30 = arith.cmpi eq, %28, %29 : vector<4x256xi32>
    %cst_11 = arith.constant 0.000000e+00 : f32
    %31 = vector.broadcast %cst_11 : f32 to vector<4x256xf32>
    %32 = arith.select %30, %23, %31 : vector<4x256xi1>, vector<4x256xf32>
    %cst_12 = arith.constant dense<0.000000e+00> : vector<256xf32>
    %33 = vector.multi_reduction <add>, %32, %cst_12 [0] : vector<4x256xf32> to vector<256xf32>
    %34 = vector.shape_cast %33 : vector<256xf32> to vector<1x256xf32>
    %cst_13 = arith.constant dense<0.000000e+00> : vector<256xf32>
    %35 = vector.multi_reduction <add>, %23, %cst_13 [0] : vector<4x256xf32> to vector<256xf32>
    %36 = vector.shape_cast %35 : vector<256xf32> to vector<1x256xf32>
    %cst_14 = arith.constant 1.000000e+00 : f32
    %cst_15 = arith.constant 2.500000e-02 : f32
    %37 = arith.subf %cst_14, %cst_15 : f32
    %38 = vector.broadcast %37 : f32 to vector<1x256xf32>
    %39 = arith.mulf %38, %27 : vector<1x256xf32>
    %cst_16 = arith.constant 2.500000e-02 : f32
    %40 = vector.broadcast %cst_16 : f32 to vector<1x256xf32>
    %41 = arith.mulf %40, %36 : vector<1x256xf32>
    %42 = arith.subf %39, %41 : vector<1x256xf32>
    %cst_17 = arith.constant 0.899999976 : f32
    %cst_18 = arith.constant 2.500000e-02 : f32
    %43 = arith.subf %cst_17, %cst_18 : f32
    %44 = vector.broadcast %43 : f32 to vector<1x256xf32>
    %45 = arith.mulf %44, %34 : vector<1x256xf32>
    %46 = arith.subf %42, %45 : vector<1x256xf32>
    %cst_19 = arith.constant 0.000000e+00 : f32
    %47 = vector.broadcast %cst_19 : f32 to vector<1x256xf32>
    %48 = arith.select %17, %47, %46 : vector<1x256xi1>, vector<1x256xf32>
    %cst_20 = arith.constant 0.000000e+00 : f32
    %cst_21 = arith.constant 1.000000e+00 : f32
    %49 = vector.broadcast %cst_20 : f32 to vector<1x256xf32>
    %50 = vector.broadcast %cst_21 : f32 to vector<1x256xf32>
    %51 = arith.select %17, %49, %50 : vector<1x256xi1>, vector<1x256xf32>
    %c0_22 = arith.constant 0 : index
    %c0_23 = arith.constant 0 : index
    %52 = vector.load %arg6[%c0_22, %c0_23] : memref<1x256xf32, #tpu.memory_space<vmem>>, vector<1x256xf32>
    %53 = arith.addf %52, %48 : vector<1x256xf32>
    %c0_24 = arith.constant 0 : index
    %c0_25 = arith.constant 0 : index
    %54 = vector.load %arg6[%c0_24, %c0_25] : memref<1x256xf32, #tpu.memory_space<vmem>>, vector<1x256xf32>
    tpu.vector_store %arg6[%c0_24, %c0_25], %53 {strides = array<i32>} : memref<1x256xf32, #tpu.memory_space<vmem>>, vector<1x256xf32>,
    %c0_26 = arith.constant 0 : index
    %c0_27 = arith.constant 0 : index
    %55 = vector.load %arg7[%c0_26, %c0_27] : memref<1x256xf32, #tpu.memory_space<vmem>>, vector<1x256xf32>
    %56 = arith.addf %55, %51 : vector<1x256xf32>
    %c0_28 = arith.constant 0 : index
    %c0_29 = arith.constant 0 : index
    %57 = vector.load %arg7[%c0_28, %c0_29] : memref<1x256xf32, #tpu.memory_space<vmem>>, vector<1x256xf32>
    tpu.vector_store %arg7[%c0_28, %c0_29], %56 {strides = array<i32>} : memref<1x256xf32, #tpu.memory_space<vmem>>, vector<1x256xf32>,
    %c0_i32_30 = arith.constant 0 : i32
    %58 = arith.cmpi eq, %arg2, %c0_i32_30 : i32
    %59 = arith.extui %58 : i1 to i32
    %c0_i32_31 = arith.constant 0 : i32
    %60 = arith.cmpi ne, %59, %c0_i32_31 : i32
    scf.if %60 {
      %c0_32 = arith.constant 0 : index
      %c0_33 = arith.constant 0 : index
      %61 = vector.load %arg6[%c0_32, %c0_33] : memref<1x256xf32, #tpu.memory_space<vmem>>, vector<1x256xf32>
      %62 = vector.shape_cast %61 : vector<1x256xf32> to vector<1x1x256xf32>
      %cst_34 = arith.constant dense<0.000000e+00> : vector<1xf32>
      %63 = vector.multi_reduction <add>, %62, %cst_34 [1, 2] : vector<1x1x256xf32> to vector<1xf32>
      %64 = vector.shape_cast %63 : vector<1xf32> to vector<1x1x1xf32>
      %65 = vector.extract %64[0, 0, 0] : f32 from vector<1x1x1xf32>
      %c0_35 = arith.constant 0 : index
      %c0_36 = arith.constant 0 : index
      %66 = vector.load %arg7[%c0_35, %c0_36] : memref<1x256xf32, #tpu.memory_space<vmem>>, vector<1x256xf32>
      %67 = vector.shape_cast %66 : vector<1x256xf32> to vector<1x1x256xf32>
      %cst_37 = arith.constant dense<0.000000e+00> : vector<1xf32>
      %68 = vector.multi_reduction <add>, %67, %cst_37 [1, 2] : vector<1x1x256xf32> to vector<1xf32>
      %69 = vector.shape_cast %68 : vector<1xf32> to vector<1x1x1xf32>
      %70 = vector.extract %69[0, 0, 0] : f32 from vector<1x1x1xf32>
      %71 = tpu.iota {dimensions = array<i32: 2>} : vector<1x1x2x128xi32>
      %c0_i32_38 = arith.constant 0 : i32
      %72 = vector.broadcast %c0_i32_38 : i32 to vector<1x1x2x128xi32>
      %73 = arith.cmpi eq, %71, %72 : vector<1x1x2x128xi32>
      %74 = vector.broadcast %65 : f32 to vector<1x1x2x128xf32>
      %75 = vector.broadcast %70 : f32 to vector<1x1x2x128xf32>
      %76 = arith.select %73, %74, %75 : vector<1x1x2x128xi1>, vector<1x1x2x128xf32>
      %c0_39 = arith.constant 0 : index
      %c0_40 = arith.constant 0 : index
      %c0_41 = arith.constant 0 : index
      %c0_42 = arith.constant 0 : index
      %77 = vector.load %arg5[%c0_39, %c0_40, %c0_41, %c0_42] : memref<1x1x2x128xf32, #tpu.memory_space<vmem>>, vector<1x1x2x128xf32>
      tpu.vector_store %arg5[%c0_39, %c0_40, %c0_41, %c0_42], %76 {strides = array<i32>} : memref<1x1x2x128xf32, #tpu.memory_space<vmem>>, vector<1x1x2x128xf32>,
    } else {
    }
    return
  }
  func.func @transform_0(%arg0: i32, %arg1: i32, %arg2: i32) -> (i32, i32, i32) {
    %c1_i32 = arith.constant 1 : i32
    %0 = arith.muli %arg1, %c1_i32 : i32
    %1 = arith.addi %0, %arg2 : i32
    %c0_i32 = arith.constant 0 : i32
    %2 = arith.minsi %1, %c0_i32 : i32
    %c0_i32_0 = arith.constant 0 : i32
    %c0_i32_1 = arith.constant 0 : i32
    return %arg0, %c0_i32_0, %2 : i32, i32, i32
  }
  func.func @transform_1(%arg0: i32, %arg1: i32, %arg2: i32) -> (i32, i32, i32) {
    %c1_i32 = arith.constant 1 : i32
    %0 = arith.muli %arg1, %c1_i32 : i32
    %1 = arith.addi %0, %arg2 : i32
    %c0_i32 = arith.constant 0 : i32
    %2 = arith.minsi %1, %c0_i32 : i32
    %c0_i32_0 = arith.constant 0 : i32
    %c0_i32_1 = arith.constant 0 : i32
    return %arg0, %c0_i32_0, %2 : i32, i32, i32
  }
  func.func @transform_2(%arg0: i32, %arg1: i32, %arg2: i32) -> (i32, i32, i32, i32) {
    %c0_i32 = arith.constant 0 : i32
    %c0_i32_0 = arith.constant 0 : i32
    %c0_i32_1 = arith.constant 0 : i32
    return %arg0, %arg1, %c0_i32, %c0_i32_0 : i32, i32, i32, i32
  }
}

</mosaic_0001>

<llo_original>
// kernel: tpu_custom_call.1
$region0: #{tpu_custom_call.1}
  #allocation0 [shape = 'u32[]', space=smem, size = 0x4, offset = 0x4, fixed_abs, tag = 'smem constant byte address 0x4 - core index']
  #allocation1 [shape = 'u32[144,128]{1,0:T(1,128)}', space=vmem, size = 0x12000, scoped, tag = 'internal scratch']
  #allocation2 [shape = 'f32[1,256]{1,0:T(1,128)}', space=vmem, size = 0x400, scoped, tag = 'scratch operand']
  #allocation3 [shape = 'f32[1,256]{1,0:T(1,128)}', space=vmem, size = 0x400, scoped, tag = 'scratch operand']
  #allocation4 [shape = 's32[4,256]{1,0:T(4,128)}', space=vmem, size = 0x1000, scoped, tag = 'scratch operand']
  %s0 = inlined_call_operand.hbm [shape: f32[2,4,256], index: 0, kind: input, shape index: {}]
  %s1 = inlined_call_operand.hbm [shape: s32[2,1,256], index: 1, kind: input, shape index: {}]
  %s2 = inlined_call_operand.hbm [shape: f32[2,1,2,128], index: 2, kind: output, shape index: {}]
  %s3 = sld [smem:[#allocation0]]
  $region57: #{tpu_custom_call.1} parent=0
    _
  %s5 = ssub.s32 1, %s3
  %s6 = scalar_select 0, %s5, %s3
  $region1: #{tpu_custom_call.1} parent=0
    #allocation5 [shape = 'u8[8192]{0}', space=vmem, size = 0x2000, scoped, tag = 'input window, operand 0']
    #allocation6 [shape = 's32[2]{0}', space=sflag, size = 0x8, scoped, tag = 'scoped memory for tpu_custom_call.1']
    #allocation7 [shape = 's32[2]{0}', space=sflag, size = 0x8, scoped, tag = 'scoped memory for tpu_custom_call.1']
    #allocation8 [shape = 'u8[2048]{0}', space=vmem, size = 0x800, scoped, tag = 'input window, operand 1']
    #allocation9 [shape = 's32[2]{0}', space=sflag, size = 0x8, scoped, tag = 'scoped memory for tpu_custom_call.1']
    #allocation10 [shape = 'u8[2048]{0}', space=vmem, size = 0x800, scoped, tag = 'output window, operand 0']
    %7 = vsyncpa [#allocation6], 0
    %s8 = scalar_lea.sflag [#allocation6], 1
    %9 = vsyncpa %s8, 0
    %10 = vsyncpa [#allocation9], 0
    %s11 = scalar_lea.sflag [#allocation9], 1
    %12 = vsyncpa %s11, 0
    %13 = vsyncpa [#allocation7], 0
    %s14 = scalar_lea.sflag [#allocation7], 1
    %15 = vsyncpa %s14, 0
    loop: start=0, step=1, limit=4
    $region2: #{tpu_custom_call.1} parent=1 // loop_pre_header
      _
    $region3: #{tpu_custom_call.1} parent=1 // loop_header
      %s17 = sphi 0, %s21
      %p18 = scmp.ge.s32.totalorder %s17, 4
      %s24 = sphi 0, %s43
      %s25 = sphi 0, %s39
      %s26 = sphi 0, %s35
      %s27 = sphi 0, %s24
      %s28 = sphi 0, %s25
      %s29 = sphi 0, %s26
      %s30 = sphi 0, %s27
      %s31 = sphi 0, %s28
      %s32 = sphi 0, %s29
      %s54 = sphi 0, %s56
      %s57 = sphi 0, %s54
      %s58 = sphi 0, %s57
      %s74 = sphi 0, %s58
      %s88 = sphi 0, %s90
      %s91 = sphi 0, %s88
      %s92 = sphi 0, %s91
      %s108 = sphi 0, %s92
      %s116 = sphi 0, %s118
      %s119 = sphi 0, %s116
      %s120 = sphi 0, %s119
      %s136 = sphi 0, %s120
    $region4: #{tpu_custom_call.1} parent=1 // loop_header_branch
      %20 = sbr.rel (%p18) target = $region8
    $region5: #{tpu_custom_call.1} parent=1 // loop_body
      %s22 = ssub.s32 %s17, 1
      %s23 = ssub.s32 %s17, 2
      %s33 = sadd.s32 1, %s26
      %p34 = scmp.ge.s32.totalorder %s33, 1
      %s35 = scalar_select %p34, 0, %s33
      %s36 = sadd.s32 1, %s25
      %s37 = scalar_select %p34, %s36, %s25
      %p38 = scmp.ge.s32.totalorder %s37, 1
      %s39 = scalar_select %p38, 0, %s37
      %s40 = sadd.s32 1, %s24
      %s41 = scalar_select %p38, %s40, %s24
      %p42 = scmp.ge.s32.totalorder %s41, 2
      %s43 = scalar_select %p42, 0, %s41
      %s44 = sadd.s32 %s25, %s26
      %p45 = scmp.lt.s32.totalorder %s44, 0
      %s46 = scalar_select %p45, %s44, 0
      %s47 = sadd.s32 %s39, %s35
      %p48 = scmp.lt.s32.totalorder %s47, 0
      %s49 = scalar_select %p48, %s47, 0
      %s50 = ssub.s32 %s24, %s43
      %s51 = ssub.s32 %s46, %s49
      %s52 = sor.u32 %s50, %s51
      %p53 = scmp.eq.s32.totalorder %s52, 0
      %s55 = sadd.s32 %s54, 1
      %s56 = scalar_select %p53, %s54, %s55
      %p59 = pneg %p53
      %p60 = scmp.eq.s32.totalorder %s17, 1
      %p61 = por %p59, %p60
      %p62 = scmp.ne.s32.totalorder %s54, %s57
      %p63 = scmp.eq.s32.totalorder %s17, 0
      %p64 = por %p62, %p63
      %p65 = scmp.ne.s32.totalorder %s54, %s57
      %p66 = scmp.eq.s32.totalorder %s22, 1
      %p67 = por %p65, %p66
      %p68 = scmp.ne.s32.totalorder %s57, %s58
      %p69 = scmp.eq.s32.totalorder %s22, 0
      %p70 = por %p68, %p69
      %p71 = scmp.ne.s32.totalorder %s57, %s58
      %p72 = scmp.eq.s32.totalorder %s23, 1
      %p73 = por %p71, %p72
      %p75 = scmp.ne.s32.totalorder %s58, %s74
      %p76 = scmp.eq.s32.totalorder %s23, 0
      %p77 = por %p75, %p76
      %s78 = sadd.s32 %s25, %s26
      %p79 = scmp.lt.s32.totalorder %s78, 0
      %s80 = scalar_select %p79, %s78, 0
      %s81 = sadd.s32 %s39, %s35
      %p82 = scmp.lt.s32.totalorder %s81, 0
      %s83 = scalar_select %p82, %s81, 0
      %s84 = ssub.s32 %s24, %s43
      %s85 = ssub.s32 %s80, %s83
      %s86 = sor.u32 %s84, %s85
      %p87 = scmp.eq.s32.totalorder %s86, 0
      %s89 = sadd.s32 %s88, 1
      %s90 = scalar_select %p87, %s88, %s89
      %p93 = pneg %p87
      %p94 = scmp.eq.s32.totalorder %s17, 1
      %p95 = por %p93, %p94
      %p96 = scmp.ne.s32.totalorder %s88, %s91
      %p97 = scmp.eq.s32.totalorder %s17, 0
      %p98 = por %p96, %p97
      %p99 = scmp.ne.s32.totalorder %s88, %s91
      %p100 = scmp.eq.s32.totalorder %s22, 1
      %p101 = por %p99, %p100
      %p102 = scmp.ne.s32.totalorder %s91, %s92
      %p103 = scmp.eq.s32.totalorder %s22, 0
      %p104 = por %p102, %p103
      %p105 = scmp.ne.s32.totalorder %s91, %s92
      %p106 = scmp.eq.s32.totalorder %s23, 1
      %p107 = por %p105, %p106
      %p109 = scmp.ne.s32.totalorder %s92, %s108
      %p110 = scmp.eq.s32.totalorder %s23, 0
      %p111 = por %p109, %p110
      %s112 = ssub.s32 %s24, %s43
      %s113 = ssub.s32 %s25, %s39
      %s114 = sor.u32 %s112, %s113
      %p115 = scmp.eq.s32.totalorder %s114, 0
      %s117 = sadd.s32 %s116, 1
      %s118 = scalar_select %p115, %s116, %s117
      %p121 = pneg %p115
      %p122 = scmp.eq.s32.totalorder %s17, 1
      %p123 = por %p121, %p122
      %p124 = scmp.ne.s32.totalorder %s116, %s119
      %p125 = scmp.eq.s32.totalorder %s17, 0
      %p126 = por %p124, %p125
      %p127 = scmp.ne.s32.totalorder %s116, %s119
      %p128 = scmp.eq.s32.totalorder %s22, 1
      %p129 = por %p127, %p128
      %p130 = scmp.ne.s32.totalorder %s119, %s120
      %p131 = scmp.eq.s32.totalorder %s22, 0
      %p132 = por %p130, %p131
      %p133 = scmp.ne.s32.totalorder %s119, %s120
      %p134 = scmp.eq.s32.totalorder %s23, 1
      %p135 = por %p133, %p134
      %p137 = scmp.ne.s32.totalorder %s120, %s136
      %p138 = scmp.eq.s32.totalorder %s23, 0
      %p139 = por %p137, %p138
      %p140 = scmp.le.s32.totalorder 1, %s17
      %p141 = scmp.lt.s32.totalorder %s17, 3
      %p142 = pnand %p140, %p141
      %p143 = pneg %p142
      // Predicated region
      $region9: #{tpu_custom_call.1} parent=5 // pred_check
        _
      $region10: #{tpu_custom_call.1} parent=5 // pred_check_branch
        %145 = sbr.rel (%p142) target = $region12
      $region11: #{tpu_custom_call.1} parent=5 // pred_region
        %s146 = ssub.s32 %s17, 1
      $region12: #{tpu_custom_call.1} parent=5 // pred_fallthru
        _
      %p147 = scmp.lt.s32.totalorder %s17, 2
      // Predicated region
      $region13: #{tpu_custom_call.1} parent=5 // pred_check
        %p148 = pneg %p147
      $region14: #{tpu_custom_call.1} parent=5 // pred_check_branch
        %150 = sbr.rel (%p148) target = $region16
      $region15: #{tpu_custom_call.1} parent=5 // pred_region
        // Predicated region
        $region17: #{tpu_custom_call.1} parent=15 // pred_check
          %p151 = pneg %p64
        $region18: #{tpu_custom_call.1} parent=15 // pred_check_branch
          %153 = sbr.rel (%p151) target = $region20
        $region19: #{tpu_custom_call.1} parent=15 // pred_region
          %s154 = sand.u32 %s54, 1
          %s155 = scalar_lea.sflag [#allocation6], %s154
          %s156 = sand.u32 %s54, 1
          %s157 = smul.addr %s156, 8
          %s158 = scalar_lea.vmem [#allocation5], %s157
          %s159 = sadd.s32 %s25, %s26
          %p160 = scmp.lt.s32.totalorder %s159, 0
          %s161 = scalar_select %p160, %s159, 0
          %s162 = smul.u32 2, %s161
          %s164 = ssub.s32 128, 128
          %165 = vsyncadd %s155, %s164
          %s166 = smul.addr %s24, 2
          %s167 = sadd.s32 %s162, %s166
          %s168 = smul.addr %s167, 64
          %s169 = scalar_lea.hbm %s0, %s168
          %s171 = sshll.u32 %s158, 4
          %s172 = int_to_ptr.vmem [resolvable:$true] %s171
          %174 = dma.hbm_to_vmem [thread:$0]  %s169, 128, %s172, %s155
        $region20: #{tpu_custom_call.1} parent=15 // pred_fallthru
          _
        // Predicated region
        $region21: #{tpu_custom_call.1} parent=15 // pred_check
          %p175 = pneg %p98
        $region22: #{tpu_custom_call.1} parent=15 // pred_check_branch
          %177 = sbr.rel (%p175) target = $region24
        $region23: #{tpu_custom_call.1} parent=15 // pred_region
          %s178 = sand.u32 %s88, 1
          %s179 = scalar_lea.sflag [#allocation9], %s178
          %s180 = sand.u32 %s88, 1
          %s181 = smul.addr %s180, 2
          %s182 = scalar_lea.vmem [#allocation8], %s181
          %s183 = sadd.s32 %s25, %s26
          %p184 = scmp.lt.s32.totalorder %s183, 0
          %s185 = scalar_select %p184, %s183, 0
          %s186 = smul.u32 2, %s185
          %s188 = ssub.s32 32, 32
          %189 = vsyncadd %s179, %s188
          %s190 = smul.addr %s24, 2
          %s191 = sadd.s32 %s186, %s190
          %s192 = smul.addr %s191, 16
          %s193 = scalar_lea.hbm %s1, %s192
          %s195 = sshll.u32 %s182, 4
          %s196 = int_to_ptr.vmem [resolvable:$true] %s195
          %198 = dma.hbm_to_vmem [thread:$0]  %s193, 32, %s196, %s179
        $region24: #{tpu_custom_call.1} parent=15 // pred_fallthru
          _
      $region16: #{tpu_custom_call.1} parent=5 // pred_fallthru
        _
      %p199 = scmp.le.s32.totalorder 1, %s17
      %p200 = scmp.lt.s32.totalorder %s17, 3
      %p201 = pnand %p199, %p200
      %p202 = pneg %p201
      // Predicated region
      $region25: #{tpu_custom_call.1} parent=5 // pred_check
        _
      $region26: #{tpu_custom_call.1} parent=5 // pred_check_branch
        %204 = sbr.rel (%p201) target = $region28
      $region27: #{tpu_custom_call.1} parent=5 // pred_region
        %s205 = ssub.s32 %s17, 1
        %s206 = sand.u32 %s57, 1
        %s207 = scalar_lea.sflag [#allocation6], %s206
        %s208 = sand.u32 %s57, 1
        %s209 = smul.addr %s208, 8
        %s210 = scalar_lea.vmem [#allocation5], %s209
        // Predicated region
        $region29: #{tpu_custom_call.1} parent=27 // pred_check
          %p211 = pneg %p70
        $region30: #{tpu_custom_call.1} parent=27 // pred_check_branch
          %213 = sbr.rel (%p211) target = $region32
        $region31: #{tpu_custom_call.1} parent=27 // pred_region
          %214 = dma.done %s207, 128
        $region32: #{tpu_custom_call.1} parent=27 // pred_fallthru
          _
        %s215 = sand.u32 %s91, 1
        %s216 = scalar_lea.sflag [#allocation9], %s215
        %s217 = sand.u32 %s91, 1
        %s218 = smul.addr %s217, 2
        %s219 = scalar_lea.vmem [#allocation8], %s218
        // Predicated region
        $region33: #{tpu_custom_call.1} parent=27 // pred_check
          %p220 = pneg %p104
        $region34: #{tpu_custom_call.1} parent=27 // pred_check_branch
          %222 = sbr.rel (%p220) target = $region36
        $region35: #{tpu_custom_call.1} parent=27 // pred_region
          %223 = dma.done %s216, 32
        $region36: #{tpu_custom_call.1} parent=27 // pred_fallthru
          _
        %s224 = sand.u32 %s57, 1
        %s225 = scalar_lea.sflag [#allocation6], %s224
        %s226 = sand.u32 %s57, 1
        %s227 = smul.addr %s226, 8
        %s228 = scalar_lea.vmem [#allocation5], %s227
        %p229 = pneg %p70
        %p230 = pneg %p67
        %s231 = sand.u32 %s91, 1
        %s232 = scalar_lea.sflag [#allocation9], %s231
        %s233 = sand.u32 %s91, 1
        %s234 = smul.addr %s233, 2
        %s235 = scalar_lea.vmem [#allocation8], %s234
        %p236 = pneg %p104
        %p237 = pneg %p101
        %p238 = pneg %p132
        %p239 = pneg %p129
        %s240 = sand.u32 %s119, 1
        %s241 = scalar_lea.sflag [#allocation7], %s240
        %s242 = sand.u32 %s119, 1
        %s243 = smul.addr %s242, 2
        %s244 = scalar_lea.vmem [#allocation10], %s243
        %s245 = sadd.s32 %s28, %s29
        %p246 = scmp.lt.s32.totalorder %s245, 0
        %s247 = scalar_select %p246, %s245, 0
        %s248 = smul.u32 2, %s247
        %s249 = sadd.s32 %s28, %s29
        %p250 = scmp.lt.s32.totalorder %s249, 0
        %s251 = scalar_select %p250, %s249, 0
        %s252 = smul.u32 2, %s251
        %p253 = scmp.eq.s32.totalorder %s29, 0
        // Predicated region
        $region37: #{tpu_custom_call.1} parent=27 // pred_check
          %p254 = pneg %p253
        $region38: #{tpu_custom_call.1} parent=27 // pred_check_branch
          %256 = sbr.rel (%p254) target = $region40
        $region39: #{tpu_custom_call.1} parent=27 // pred_region
          %v257 = vlaneseq
          %vm258 = vcmp.ge.s32.totalorder %v257, 0
          %vm259 = vcmp.lt.s32.totalorder %v257, 256
          %vm260 = vmand %vm258, %vm259
          %261 = vst.msk [vmem:[#allocation2] sm:$0x3] %vm260, 0.0
          %262 = vst.msk [vmem:[#allocation3] sm:$0x3] %vm260, 0.0
          %v263 = vlaneseq
          %v264 = vshrl.u32 %v263, 7
          %v266 = vunpack.c.l.s4 839922192
          %v267 = vunpack.c.0.s8 %v266
          %v268 = vlaneseq
          %v269 = vshrl.u32 %v268, 7
          %v270 = vsub.s32 %v267, %v269
          %v271 = vrot.slane %v264, %v270
          %272 = vst [vmem:[#allocation4] sm:$0xff] %v271
        $region40: #{tpu_custom_call.1} parent=27 // pred_fallthru
          _
        %v273 = vld [vmem:[%s210] sm:$0xff]
        %v274 = vld [vmem:[%s219] sm:$0x3]
        %s275 = sadd.s32 %s28, %s29
        %s276 = smul.u32 %s275, 256
        %v277 = vlaneseq
        %v278 = vand.u32 %v277, 127
        %v279 = vadd.s32 %v278, 128
        %v280 = vstv %s276
        %v281 = vadd.s32 %v280, %v278
        %v282 = vadd.s32 %v280, %v279
        %vm283 = vcmp.ge.s32.totalorder %v281, 256
        %vm284 = vcmp.ge.s32.totalorder %v282, 256
        %vm285 = vcmp.eq.s32.totalorder %v274, 255
        %v286 = vsel %vm283, 1, 0
        %v287 = vsel %vm284, 1, 0
        %v288 = vcombine.low %v286, %v287
        %v290 = vunpack.c.l.s4 1966171168
        %v291 = vunpack.c.0.s8 %v290
        %v292 = vlaneseq
        %v293 = vshrl.u32 %v292, 7
        %v294 = vsub.s32 %v291, %v293
        %v295 = vrot.slane %v288, %v294
        %v297 = vunpack.c.l.s4 1966171168
        %v298 = vunpack.c.0.s8 %v297
        %v299 = vlaneseq
        %v300 = vshrl.u32 %v299, 7
        %v301 = vsub.s32 %v298, %v300
        %v302 = vrot.slane %v295, %v301
        %vm303 = vcmp.ne.s32.totalorder %v302, 0
        %vm304 = vmor %vm285, %vm303
        %v305 = vsel %vm304, 0, %v274
        %v307 = vcombine.high %v273, %v273
        %vm309 = vcmask 1043456
        %v310 = vsel %vm309, %v273, -inf
        %v311 = vrot.slane %v310, 4
        %v312 = vmax.f32 %v310, %v311
        %v313 = vrot.slane %v312, 2
        %v314 = vmax.f32 %v312, %v313
        %v315 = vrot.slane %v314, 1
        %v316 = vmax.f32 %v314, %v315
        %v317 = vsel %vm309, %v307, -inf
        %v318 = vrot.slane %v317, 4
        %v319 = vmax.f32 %v317, %v318
        %v320 = vrot.slane %v319, 2
        %v321 = vmax.f32 %v319, %v320
        %v322 = vrot.slane %v321, 1
        %v323 = vmax.f32 %v321, %v322
        %v326 = vcombine.low %v316, %v323
        %v328 = vsub.f32 %v273, %v326
        %v329 = vmul.f32 %v328, 1.442695
        %v330 = vpow.pop %v329
        %v332 = vcombine.high %v330, %v330
        %v334 = vsel %vm309, %v330, 0.0
        %v335 = vrot.slane %v334, 4
        %v336 = vadd.f32 %v334, %v335
        %v337 = vrot.slane %v336, 2
        %v338 = vadd.f32 %v336, %v337
        %v339 = vrot.slane %v338, 1
        %v340 = vadd.f32 %v338, %v339
        %v341 = vsel %vm309, %v332, 0.0
        %v342 = vrot.slane %v341, 4
        %v343 = vadd.f32 %v341, %v342
        %v344 = vrot.slane %v343, 2
        %v345 = vadd.f32 %v343, %v344
        %v346 = vrot.slane %v345, 1
        %v347 = vadd.f32 %v345, %v346
        %v348 = vlog2.pop %v340
        %v349 = vmul.f32 %v348, 0.6931472
        %v350 = vlog2.pop %v347
        %v351 = vmul.f32 %v350, 0.6931472
        %v352 = vld [vmem:[#allocation4] sm:$0xff]
        %v353 = vlaneseq
        %v354 = vshrl.u32 %v353, 7
        %v355 = vsub.s32 0, %v354
        %v356 = vrot.slane %v305, %v355
        %v357 = vlaneseq
        %v358 = vshrl.u32 %v357, 7
        %v359 = vsub.s32 1, %v358
        %v360 = vrot.slane %v305, %v359
        %v361 = vcombine.low %v356, %v360
        %vm362 = vcmp.eq.s32.totalorder %v352, %v361
        %v363 = vsel %vm362, %v328, 0.0
        %v365 = vcombine.high %v363, %v363
        %v367 = vsel %vm309, %v363, 0.0
        %v368 = vrot.slane %v367, 4
        %v369 = vadd.f32 %v367, %v368
        %v370 = vrot.slane %v369, 2
        %v371 = vadd.f32 %v369, %v370
        %v372 = vrot.slane %v371, 1
        %v373 = vadd.f32 %v371, %v372
        %v374 = vsel %vm309, %v365, 0.0
        %v375 = vrot.slane %v374, 4
        %v376 = vadd.f32 %v374, %v375
        %v377 = vrot.slane %v376, 2
        %v378 = vadd.f32 %v376, %v377
        %v379 = vrot.slane %v378, 1
        %v380 = vadd.f32 %v378, %v379
        %v382 = vcombine.high %v328, %v328
        %v384 = vsel %vm309, %v328, 0.0
        %v385 = vrot.slane %v384, 4
        %v386 = vadd.f32 %v384, %v385
        %v387 = vrot.slane %v386, 2
        %v388 = vadd.f32 %v386, %v387
        %v389 = vrot.slane %v388, 1
        %v390 = vadd.f32 %v388, %v389
        %v391 = vsel %vm309, %v382, 0.0
        %v392 = vrot.slane %v391, 4
        %v393 = vadd.f32 %v391, %v392
        %v394 = vrot.slane %v393, 2
        %v395 = vadd.f32 %v393, %v394
        %v396 = vrot.slane %v395, 1
        %v397 = vadd.f32 %v395, %v396
        %v398 = vmul.f32 %v349, 0.975
        %v399 = vmul.f32 %v351, 0.975
        %v400 = vmul.f32 %v390, 0.025
        %v401 = vmul.f32 %v397, 0.025
        %v402 = vsub.f32 %v398, %v400
        %v403 = vsub.f32 %v399, %v401
        %v404 = vmul.f32 %v373, 0.875
        %v405 = vmul.f32 %v380, 0.875
        %v406 = vsub.f32 %v402, %v404
        %v407 = vsub.f32 %v403, %v405
        %v410 = vcombine.low %v406, %v407
        %v412 = vunpack.c.l.s4 1966171168
        %v413 = vunpack.c.0.s8 %v412
        %v414 = vlaneseq
        %v415 = vshrl.u32 %v414, 7
        %v416 = vsub.s32 %v413, %v415
        %v417 = vrot.slane %v410, %v416
        %v419 = vunpack.c.l.s4 1966171168
        %v420 = vunpack.c.0.s8 %v419
        %v421 = vlaneseq
        %v422 = vshrl.u32 %v421, 7
        %v423 = vsub.s32 %v420, %v422
        %v424 = vrot.slane %v417, %v423
        %v426 = vsel %vm304, 0.0, %v424
        %v427 = vsel %vm304, 0.0, 1.0
        %v428 = vld [vmem:[#allocation2] sm:$0x3]
        %v429 = vadd.f32 %v428, %v426
        %v430 = vlaneseq
        %vm431 = vcmp.ge.s32.totalorder %v430, 0
        %vm432 = vcmp.lt.s32.totalorder %v430, 256
        %vm433 = vmand %vm431, %vm432
        %434 = vst.msk [vmem:[#allocation2] sm:$0x3] %vm433, %v429
        %v435 = vld [vmem:[#allocation3] sm:$0x3]
        %v436 = vadd.f32 %v435, %v427
        %437 = vst.msk [vmem:[#allocation3] sm:$0x3] %vm433, %v436
        // Predicated region
        $region41: #{tpu_custom_call.1} parent=27 // pred_check
          %p438 = pneg %p253
        $region42: #{tpu_custom_call.1} parent=27 // pred_check_branch
          %440 = sbr.rel (%p438) target = $region44
        $region43: #{tpu_custom_call.1} parent=27 // pred_region
          %v441 = vld [vmem:[#allocation2] sm:$0x3]
          %v443 = vlaneseq
          %v444 = vshrl.u32 %v443, 7
          %v445 = vsub.s32 0, %v444
          %v446 = vrot.slane %v441, %v445
          %v447 = vlaneseq
          %v448 = vshrl.u32 %v447, 7
          %v449 = vsub.s32 1, %v448
          %v450 = vrot.slane %v441, %v449
          %vm453 = vcmask 1040384
          %v454 = vsel %vm453, %v446, 0.0
          %v455 = vsel %vm453, %v450, 0.0
          %v456 = vadd.f32 %v454, %v455
          %457 = vadd.xlane.f32.xlu0 %v456
          %v458 = vpop.xlane.xlu0 %457
          %v459 = vrot.slane %v458, 4
          %v460 = vadd.f32 %v458, %v459
          %v461 = vrot.slane %v460, 2
          %v462 = vadd.f32 %v460, %v461
          %v463 = vrot.slane %v462, 1
          %v464 = vadd.f32 %v462, %v463
          %s465 = vtos %v464
          %v466 = vld [vmem:[#allocation3] sm:$0x3]
          %v468 = vlaneseq
          %v469 = vshrl.u32 %v468, 7
          %v470 = vsub.s32 0, %v469
          %v471 = vrot.slane %v466, %v470
          %v472 = vlaneseq
          %v473 = vshrl.u32 %v472, 7
          %v474 = vsub.s32 1, %v473
          %v475 = vrot.slane %v466, %v474
          %v478 = vsel %vm453, %v471, 0.0
          %v479 = vsel %vm453, %v475, 0.0
          %v480 = vadd.f32 %v478, %v479
          %481 = vadd.xlane.f32.xlu0 %v480
          %v482 = vpop.xlane.xlu0 %481
          %v483 = vrot.slane %v482, 4
          %v484 = vadd.f32 %v482, %v483
          %v485 = vrot.slane %v484, 2
          %v486 = vadd.f32 %v484, %v485
          %v487 = vrot.slane %v486, 1
          %v488 = vadd.f32 %v486, %v487
          %s489 = vtos %v488
          %v490 = vlaneseq
          %v491 = vshrl.u32 %v490, 7
          %vm492 = vcmp.eq.s32.totalorder %v491, 0
          %v493 = vstv %s465
          %v494 = vstv %s489
          %v495 = vsel %vm492, %v493, %v494
          %496 = vst [vmem:[%s244] sm:$0x3] %v495
        $region44: #{tpu_custom_call.1} parent=27 // pred_fallthru
          _
        %s497 = sand.u32 %s119, 1
        %s498 = scalar_lea.sflag [#allocation7], %s497
        %s499 = sand.u32 %s119, 1
        %s500 = smul.addr %s499, 2
        %s501 = scalar_lea.vmem [#allocation10], %s500
        // Predicated region
        $region45: #{tpu_custom_call.1} parent=27 // pred_check
          %p502 = pneg %p129
        $region46: #{tpu_custom_call.1} parent=27 // pred_check_branch
          %504 = sbr.rel (%p502) target = $region48
        $region47: #{tpu_custom_call.1} parent=27 // pred_region
          %s506 = ssub.s32 32, 32
          %507 = vsyncadd %s498, %s506
          %s508 = sadd.s32 %s28, %s27
          %s509 = smul.addr %s508, 32
          %s510 = scalar_lea.hbm %s2, %s509
          %s512 = sshll.u32 %s501, 4
          %s513 = int_to_ptr.vmem [resolvable:$true] %s512
          %515 = dma.vmem_to_hbm [thread:$0]  %s513, 32, %s510, %s498
        $region48: #{tpu_custom_call.1} parent=27 // pred_fallthru
          _
      $region28: #{tpu_custom_call.1} parent=5 // pred_fallthru
        _
      %p516 = scmp.le.s32.totalorder 2, %s17
      // Predicated region
      $region49: #{tpu_custom_call.1} parent=5 // pred_check
        %p517 = pneg %p516
      $region50: #{tpu_custom_call.1} parent=5 // pred_check_branch
        %519 = sbr.rel (%p517) target = $region52
      $region51: #{tpu_custom_call.1} parent=5 // pred_region
        %s520 = ssub.s32 %s17, 2
        // Predicated region
        $region53: #{tpu_custom_call.1} parent=51 // pred_check
          %p521 = pneg %p135
        $region54: #{tpu_custom_call.1} parent=51 // pred_check_branch
          %523 = sbr.rel (%p521) target = $region56
        $region55: #{tpu_custom_call.1} parent=51 // pred_region
          %s524 = sand.u32 %s120, 1
          %s525 = scalar_lea.sflag [#allocation7], %s524
          %s526 = sand.u32 %s120, 1
          %s527 = smul.addr %s526, 2
          %s528 = scalar_lea.vmem [#allocation10], %s527
          %529 = dma.done %s525, 32
        $region56: #{tpu_custom_call.1} parent=51 // pred_fallthru
          _
      $region52: #{tpu_custom_call.1} parent=5 // pred_fallthru
        _
    $region6: #{tpu_custom_call.1} parent=1 // loop_footer
      %s21 = sadd.s32 1, %s17
    $region7: #{tpu_custom_call.1} parent=1 // loop_footer_branch
      %16 = sbr.rel target = $region3
    $region8: #{tpu_custom_call.1} parent=1 // loop_exit
      _
    %530 = vsyncpa [#allocation6], 1
    %s531 = scalar_lea.sflag [#allocation6], 1
    %532 = vsyncpa %s531, 1
    %533 = vsyncpa [#allocation9], 1
    %s534 = scalar_lea.sflag [#allocation9], 1
    %535 = vsyncpa %s534, 1
    %536 = vsyncpa [#allocation7], 1
    %s537 = scalar_lea.sflag [#allocation7], 1
    %538 = vsyncpa %s537, 1

</llo_original>
